<compile_context>
chip_gen: v6e
topology: v6e:2x2x1
jax: 0.10.0
libtpu: 0.0.40
codegen_flags: <defaults>
</compile_context>

<pallas_src>
import jax
import jax.numpy as jnp
from jax.experimental import pallas as pl
from jax.experimental.pallas import tpu as pltpu

LANE = 128
SUBLANE = 8
NEG_FILL = -1e30  # mask value for padded logit columns (exp underflows to 0)


def _round_up(n, m):
    return ((n + m - 1) // m) * m


def mlp_kernel(x_ref,
               w1_ref, b1_ref,
               w2_ref, b2_ref,
               w3_ref, b3_ref,
               w4_ref, b4_ref,
               out_ref):
    # fc1 + relu  (bf16 MXU, f32 accumulate, f32 epilogue)
    h = jnp.dot(x_ref[...], w1_ref[...], preferred_element_type=jnp.float32)
    h = jnp.maximum(h + b1_ref[...], 0.0)
    # fc2 + relu
    h = jnp.dot(h.astype(jnp.bfloat16), w2_ref[...],
                preferred_element_type=jnp.float32)
    h = jnp.maximum(h + b2_ref[...], 0.0)
    # fc3 + relu
    h = jnp.dot(h.astype(jnp.bfloat16), w3_ref[...],
                preferred_element_type=jnp.float32)
    h = jnp.maximum(h + b3_ref[...], 0.0)
    # fc4 (padded output columns get bias = -1e30 -> masked out of softmax)
    logits = jnp.dot(h.astype(jnp.bfloat16), w4_ref[...],
                     preferred_element_type=jnp.float32)
    logits = logits + b4_ref[...]
    # log_softmax over the feature dim (f32)
    m = jnp.max(logits, axis=-1, keepdims=True)
    shifted = logits - m
    lse = jnp.log(jnp.sum(jnp.exp(shifted), axis=-1, keepdims=True))
    out_ref[...] = (shifted - lse).astype(out_ref.dtype)


def prepare_params(params):
    """Zero-pad feature dims to lane multiples and cast weights to bf16.

    Weights: (in, out) padded to (in_pad, out_pad), bf16.
    Biases:  (1, out) padded to (1, out_pad), f32.  The last layer's padded
    bias entries are NEG_FILL so padded logits never affect log_softmax.
    """
    prepared = {}
    n_layers = 4
    for i in range(1, n_layers + 1):
        w = params[f"w{i}"]
        b = params[f"b{i}"]
        fi, fo = w.shape
        fi_p = _round_up(fi, LANE)
        fo_p = _round_up(fo, LANE)
        w_p = jnp.zeros((fi_p, fo_p), jnp.float32).at[:fi, :fo].set(w)
        if i == n_layers:
            b_p = jnp.full((1, fo_p), NEG_FILL, jnp.float32).at[:, :fo].set(b)
        else:
            b_p = jnp.zeros((1, fo_p), jnp.float32).at[:, :fo].set(b)
        prepared[f"w{i}"] = w_p.astype(jnp.bfloat16)
        prepared[f"b{i}"] = b_p  # biases stay f32 for the f32 epilogue
    return prepared


def mnist_mlp_vanilla(x_nchw, params, *, tile_b_max=256):
    """x_nchw: (B, C, H, W) float32; params: dict of (in,out) weights, (1,out) biases."""
    B = x_nchw.shape[0]
    x_flat = x_nchw.reshape(B, -1)            # same as torch.flatten(x, 1)
    in_features = x_flat.shape[1]
    out_features = params["w4"].shape[1]

    p = prepare_params(params)
    in_pad = p["w1"].shape[0]
    h1 = p["w1"].shape[1]
    h2 = p["w2"].shape[1]
    h3 = p["w3"].shape[1]
    out_pad = p["w4"].shape[1]

    # Batch tiling: tile is a multiple of 8 sublanes, capped at tile_b_max.
    tile_b = min(_round_up(tile_b_max, SUBLANE), _round_up(B, SUBLANE))
    b_pad = _round_up(B, tile_b)
    grid = (pl.cdiv(b_pad, tile_b),)

    x_p = jnp.zeros((b_pad, in_pad), jnp.bfloat16)
    x_p = x_p.at[:B, :in_features].set(x_flat.astype(jnp.bfloat16))

    # Advisory cost estimate (helps XLA scheduling when embedded in a model).
    flops = 2 * b_pad * (in_pad * h1 + h1 * h2 + h2 * h3 + h3 * out_pad)
    bytes_accessed = (
        b_pad * in_pad * 2                                     # x (bf16)
        + sum(p[f"w{i}"].size for i in range(1, 5)) * 2        # weights (bf16)
        + sum(p[f"b{i}"].size for i in range(1, 5)) * 4        # biases (f32)
        + b_pad * out_pad * 4                                  # out (f32)
    )
    cost = pl.CostEstimate(flops=flops,
                           transcendentals=b_pad * out_pad,     # exp in softmax
                           bytes_accessed=bytes_accessed)

    def resident(shape):
        # Weights/biases: full-array block, same block index every grid step
        # -> loaded once, stays VMEM-resident across the whole grid.
        return pl.BlockSpec(shape, lambda i: (0, 0))

    out_p = pl.pallas_call(
        mlp_kernel,
        out_shape=jax.ShapeDtypeStruct((b_pad, out_pad), jnp.float32),
        grid=grid,
        in_specs=[
            pl.BlockSpec((tile_b, in_pad), lambda i: (i, 0)),   # x: pipelined
            resident(p["w1"].shape), resident(p["b1"].shape),
            resident(p["w2"].shape), resident(p["b2"].shape),
            resident(p["w3"].shape), resident(p["b3"].shape),
            resident(p["w4"].shape), resident(p["b4"].shape),
        ],
        out_specs=pl.BlockSpec((tile_b, out_pad), lambda i: (i, 0)),
        compiler_params=pltpu.CompilerParams(
            dimension_semantics=("parallel",)),                 # v7x megacore
        cost_estimate=cost,
    )(x_p, p["w1"], p["b1"], p["w2"], p["b2"],
      p["w3"], p["b3"], p["w4"], p["b4"])

    return out_p[:B, :out_features]


def init_params(key, in_features, out_features=10):
    """Deterministic init mirroring PyTorch Linear default (U(-1/sqrt(fan_in), +))."""
    dims = [(in_features, 392), (392, 128), (128, 64), (64, out_features)]
    params = {}
    for i, (fan_in, fan_out) in enumerate(dims, start=1):
        key, kw, kb = jax.random.split(key, 3)
        bound = 1.0 / (fan_in ** 0.5)
        params[f"w{i}"] = jax.random.uniform(
            kw, (fan_in, fan_out), jnp.float32, -bound, bound)
        params[f"b{i}"] = jax.random.uniform(
            kb, (1, fan_out), jnp.float32, -bound, bound)
    return params


def reference_forward(x_nchw, params):
    """Pure-JAX reference with the same bf16-matmul / f32-accumulate numerics."""
    x = x_nchw.reshape(x_nchw.shape[0], -1)

    def dense(a, w, b):
        return jnp.dot(a.astype(jnp.bfloat16), w.astype(jnp.bfloat16),
                       preferred_element_type=jnp.float32) + b

    h = jnp.maximum(dense(x, params["w1"], params["b1"]), 0.0)
    h = jnp.maximum(dense(h, params["w2"], params["b2"]), 0.0)
    h = jnp.maximum(dense(h, params["w3"], params["b3"]), 0.0)
    logits = dense(h, params["w4"], params["b4"])
    return jax.nn.log_softmax(logits, axis=1)


if __name__ == "__main__":
    key = jax.random.PRNGKey(0)
    k_x, k_p = jax.random.split(key)

    # Small MNIST-like input: batch=2, 1 channel, 16x16 -> in_features=256
    B, C, H, W = 2, 1, 16, 16
    in_features = C * H * W
    x = jax.random.normal(k_x, (B, C, H, W), jnp.float32)
    params = init_params(k_p, in_features, out_features=10)

    out = mnist_mlp_vanilla(x, params)
    out = jax.block_until_ready(out)

    ref = reference_forward(x, params)
    assert out.shape == (B, 10)
    assert jnp.allclose(out, ref, atol=1e-3, rtol=1e-3), (
        f"max abs diff = {jnp.max(jnp.abs(out - ref))}")
    print("KERNEL_OK")
</pallas_src>

<mosaic_0001>
module attributes {stable_mosaic.version = 11 : i64} {
  func.func @mlp_kernel(%arg0: i32, %arg1: memref<8x256xbf16, #tpu.memory_space<vmem>>, %arg2: memref<256x512xbf16, #tpu.memory_space<vmem>>, %arg3: memref<1x512xf32, #tpu.memory_space<vmem>>, %arg4: memref<512x128xbf16, #tpu.memory_space<vmem>>, %arg5: memref<1x128xf32, #tpu.memory_space<vmem>>, %arg6: memref<128x128xbf16, #tpu.memory_space<vmem>>, %arg7: memref<1x128xf32, #tpu.memory_space<vmem>>, %arg8: memref<128x128xbf16, #tpu.memory_space<vmem>>, %arg9: memref<1x128xf32, #tpu.memory_space<vmem>>, %arg10: memref<8x128xf32, #tpu.memory_space<vmem>>) attributes {dimension_semantics = [#tpu.dimension_semantics<parallel>], iteration_bounds = array<i64: 1>, scalar_prefetch = 0 : i64, scratch_operands = 0 : i64, tpu.core_type = #tpu.core_type<tc>, window_params = [{transform_indices = @transform_0, window_bounds = array<i64: 8, 256>}, {pipeline_mode = #tpu.pipeline_mode<synchronous>, transform_indices = @transform_1, window_bounds = array<i64: 256, 512>}, {pipeline_mode = #tpu.pipeline_mode<synchronous>, transform_indices = @transform_2, window_bounds = array<i64: 1, 512>}, {pipeline_mode = #tpu.pipeline_mode<synchronous>, transform_indices = @transform_3, window_bounds = array<i64: 512, 128>}, {pipeline_mode = #tpu.pipeline_mode<synchronous>, transform_indices = @transform_4, window_bounds = array<i64: 1, 128>}, {pipeline_mode = #tpu.pipeline_mode<synchronous>, transform_indices = @transform_5, window_bounds = array<i64: 128, 128>}, {pipeline_mode = #tpu.pipeline_mode<synchronous>, transform_indices = @transform_6, window_bounds = array<i64: 1, 128>}, {pipeline_mode = #tpu.pipeline_mode<synchronous>, transform_indices = @transform_7, window_bounds = array<i64: 128, 128>}, {pipeline_mode = #tpu.pipeline_mode<synchronous>, transform_indices = @transform_8, window_bounds = array<i64: 1, 128>}, {transform_indices = @transform_9, window_bounds = array<i64: 8, 128>}]} {
    %c0 = arith.constant 0 : index
    %c0_0 = arith.constant 0 : index
    %0 = vector.load %arg1[%c0, %c0_0] : memref<8x256xbf16, #tpu.memory_space<vmem>>, vector<8x256xbf16>
    %c0_1 = arith.constant 0 : index
    %c0_2 = arith.constant 0 : index
    %1 = vector.load %arg2[%c0_1, %c0_2] : memref<256x512xbf16, #tpu.memory_space<vmem>>, vector<256x512xbf16>
    %cst = arith.constant dense<0.000000e+00> : vector<8x512xf32>
    %2 = tpu.matmul %0, %1, %cst {dimension_numbers = #tpu.dot_dimension_numbers<[1], [0], [0], [1], [0, 0, 1, 1], [], []>} : vector<8x256xbf16>, vector<256x512xbf16>, vector<8x512xf32> -> vector<8x512xf32>
    %c0_3 = arith.constant 0 : index
    %c0_4 = arith.constant 0 : index
    %3 = vector.load %arg3[%c0_3, %c0_4] : memref<1x512xf32, #tpu.memory_space<vmem>>, vector<1x512xf32>
    %4 = vector.broadcast %3 : vector<1x512xf32> to vector<8x512xf32>
    %5 = arith.addf %2, %4 : vector<8x512xf32>
    %cst_5 = arith.constant 0.000000e+00 : f32
    %6 = vector.broadcast %cst_5 : f32 to vector<8x512xf32>
    %7 = arith.maximumf %5, %6 : vector<8x512xf32>
    %8 = arith.truncf %7 : vector<8x512xf32> to vector<8x512xbf16>
    %c0_6 = arith.constant 0 : index
    %c0_7 = arith.constant 0 : index
    %9 = vector.load %arg4[%c0_6, %c0_7] : memref<512x128xbf16, #tpu.memory_space<vmem>>, vector<512x128xbf16>
    %cst_8 = arith.constant dense<0.000000e+00> : vector<8x128xf32>
    %10 = tpu.matmul %8, %9, %cst_8 {dimension_numbers = #tpu.dot_dimension_numbers<[1], [0], [0], [1], [0, 0, 1, 1], [], []>} : vector<8x512xbf16>, vector<512x128xbf16>, vector<8x128xf32> -> vector<8x128xf32>
    %c0_9 = arith.constant 0 : index
    %c0_10 = arith.constant 0 : index
    %11 = vector.load %arg5[%c0_9, %c0_10] : memref<1x128xf32, #tpu.memory_space<vmem>>, vector<1x128xf32>
    %12 = vector.broadcast %11 : vector<1x128xf32> to vector<8x128xf32>
    %13 = arith.addf %10, %12 : vector<8x128xf32>
    %cst_11 = arith.constant 0.000000e+00 : f32
    %14 = vector.broadcast %cst_11 : f32 to vector<8x128xf32>
    %15 = arith.maximumf %13, %14 : vector<8x128xf32>
    %16 = arith.truncf %15 : vector<8x128xf32> to vector<8x128xbf16>
    %c0_12 = arith.constant 0 : index
    %c0_13 = arith.constant 0 : index
    %17 = vector.load %arg6[%c0_12, %c0_13] : memref<128x128xbf16, #tpu.memory_space<vmem>>, vector<128x128xbf16>
    %cst_14 = arith.constant dense<0.000000e+00> : vector<8x128xf32>
    %18 = tpu.matmul %16, %17, %cst_14 {dimension_numbers = #tpu.dot_dimension_numbers<[1], [0], [0], [1], [0, 0, 1, 1], [], []>} : vector<8x128xbf16>, vector<128x128xbf16>, vector<8x128xf32> -> vector<8x128xf32>
    %c0_15 = arith.constant 0 : index
    %c0_16 = arith.constant 0 : index
    %19 = vector.load %arg7[%c0_15, %c0_16] : memref<1x128xf32, #tpu.memory_space<vmem>>, vector<1x128xf32>
    %20 = vector.broadcast %19 : vector<1x128xf32> to vector<8x128xf32>
    %21 = arith.addf %18, %20 : vector<8x128xf32>
    %cst_17 = arith.constant 0.000000e+00 : f32
    %22 = vector.broadcast %cst_17 : f32 to vector<8x128xf32>
    %23 = arith.maximumf %21, %22 : vector<8x128xf32>
    %24 = arith.truncf %23 : vector<8x128xf32> to vector<8x128xbf16>
    %c0_18 = arith.constant 0 : index
    %c0_19 = arith.constant 0 : index
    %25 = vector.load %arg8[%c0_18, %c0_19] : memref<128x128xbf16, #tpu.memory_space<vmem>>, vector<128x128xbf16>
    %cst_20 = arith.constant dense<0.000000e+00> : vector<8x128xf32>
    %26 = tpu.matmul %24, %25, %cst_20 {dimension_numbers = #tpu.dot_dimension_numbers<[1], [0], [0], [1], [0, 0, 1, 1], [], []>} : vector<8x128xbf16>, vector<128x128xbf16>, vector<8x128xf32> -> vector<8x128xf32>
    %c0_21 = arith.constant 0 : index
    %c0_22 = arith.constant 0 : index
    %27 = vector.load %arg9[%c0_21, %c0_22] : memref<1x128xf32, #tpu.memory_space<vmem>>, vector<1x128xf32>
    %28 = vector.broadcast %27 : vector<1x128xf32> to vector<8x128xf32>
    %29 = arith.addf %26, %28 : vector<8x128xf32>
    %cst_23 = arith.constant dense<0xFF800000> : vector<8xf32>
    %30 = vector.multi_reduction <maximumf>, %29, %cst_23 [1] : vector<8x128xf32> to vector<8xf32>
    %31 = vector.shape_cast %30 : vector<8xf32> to vector<8x1xf32>
    %32 = vector.broadcast %31 : vector<8x1xf32> to vector<8x128xf32>
    %33 = arith.subf %29, %32 : vector<8x128xf32>
    %34 = math.exp %33 : vector<8x128xf32>
    %cst_24 = arith.constant dense<0.000000e+00> : vector<8xf32>
    %35 = vector.multi_reduction <add>, %34, %cst_24 [1] : vector<8x128xf32> to vector<8xf32>
    %36 = vector.shape_cast %35 : vector<8xf32> to vector<8x1xf32>
    %37 = math.log %36 : vector<8x1xf32>
    %38 = vector.broadcast %37 : vector<8x1xf32> to vector<8x128xf32>
    %39 = arith.subf %33, %38 : vector<8x128xf32>
    %c0_25 = arith.constant 0 : index
    %c0_26 = arith.constant 0 : index
    %40 = vector.load %arg10[%c0_25, %c0_26] : memref<8x128xf32, #tpu.memory_space<vmem>>, vector<8x128xf32>
    tpu.vector_store %arg10[%c0_25, %c0_26], %39 {strides = array<i32>} : memref<8x128xf32, #tpu.memory_space<vmem>>, vector<8x128xf32>,
    return
  }
  func.func @transform_0(%arg0: i32) -> (i32, i32) {
    %c0_i32 = arith.constant 0 : i32
    %c0_i32_0 = arith.constant 0 : i32
    return %arg0, %c0_i32 : i32, i32
  }
  func.func @transform_1(%arg0: i32) -> (i32, i32) {
    %c0_i32 = arith.constant 0 : i32
    %c0_i32_0 = arith.constant 0 : i32
    %c0_i32_1 = arith.constant 0 : i32
    return %c0_i32, %c0_i32_0 : i32, i32
  }
  func.func @transform_2(%arg0: i32) -> (i32, i32) {
    %c0_i32 = arith.constant 0 : i32
    %c0_i32_0 = arith.constant 0 : i32
    %c0_i32_1 = arith.constant 0 : i32
    return %c0_i32, %c0_i32_0 : i32, i32
  }
  func.func @transform_3(%arg0: i32) -> (i32, i32) {
    %c0_i32 = arith.constant 0 : i32
    %c0_i32_0 = arith.constant 0 : i32
    %c0_i32_1 = arith.constant 0 : i32
    return %c0_i32, %c0_i32_0 : i32, i32
  }
  func.func @transform_4(%arg0: i32) -> (i32, i32) {
    %c0_i32 = arith.constant 0 : i32
    %c0_i32_0 = arith.constant 0 : i32
    %c0_i32_1 = arith.constant 0 : i32
    return %c0_i32, %c0_i32_0 : i32, i32
  }
  func.func @transform_5(%arg0: i32) -> (i32, i32) {
    %c0_i32 = arith.constant 0 : i32
    %c0_i32_0 = arith.constant 0 : i32
    %c0_i32_1 = arith.constant 0 : i32
    return %c0_i32, %c0_i32_0 : i32, i32
  }
  func.func @transform_6(%arg0: i32) -> (i32, i32) {
    %c0_i32 = arith.constant 0 : i32
    %c0_i32_0 = arith.constant 0 : i32
    %c0_i32_1 = arith.constant 0 : i32
    return %c0_i32, %c0_i32_0 : i32, i32
  }
  func.func @transform_7(%arg0: i32) -> (i32, i32) {
    %c0_i32 = arith.constant 0 : i32
    %c0_i32_0 = arith.constant 0 : i32
    %c0_i32_1 = arith.constant 0 : i32
    return %c0_i32, %c0_i32_0 : i32, i32
  }
  func.func @transform_8(%arg0: i32) -> (i32, i32) {
    %c0_i32 = arith.constant 0 : i32
    %c0_i32_0 = arith.constant 0 : i32
    %c0_i32_1 = arith.constant 0 : i32
    return %c0_i32, %c0_i32_0 : i32, i32
  }
  func.func @transform_9(%arg0: i32) -> (i32, i32) {
    %c0_i32 = arith.constant 0 : i32
    %c0_i32_0 = arith.constant 0 : i32
    return %arg0, %c0_i32 : i32, i32
  }
}

</mosaic_0001>

<llo_original>
// kernel: tpu_custom_call.1
$region0: #{tpu_custom_call.1}
  #allocation0 [shape = 'u32[]', space=smem, size = 0x4, offset = 0x4, fixed_abs, tag = 'smem constant byte address 0x4 - core index']
  #allocation1 [shape = 'u32[144,128]{1,0:T(1,128)}', space=vmem, size = 0x12000, scoped, tag = 'internal scratch']
  %s0 = inlined_call_operand.hbm [shape: bf16[8,256], index: 0, kind: input, shape index: {}]
  %s1 = inlined_call_operand.hbm [shape: bf16[256,512], index: 1, kind: input, shape index: {}]
  %s2 = inlined_call_operand.hbm [shape: f32[1,512], index: 2, kind: input, shape index: {}]
  %s3 = inlined_call_operand.hbm [shape: bf16[512,128], index: 3, kind: input, shape index: {}]
  %s4 = inlined_call_operand.vmem [shape: f32[1,128], index: 4, kind: input, shape index: {}]
  %s5 = inlined_call_operand.hbm [shape: bf16[128,128], index: 5, kind: input, shape index: {}]
  %s6 = inlined_call_operand.vmem [shape: f32[1,128], index: 6, kind: input, shape index: {}]
  %s7 = inlined_call_operand.hbm [shape: bf16[128,128], index: 7, kind: input, shape index: {}]
  %s8 = inlined_call_operand.vmem [shape: f32[1,128], index: 8, kind: input, shape index: {}]
  %s9 = inlined_call_operand.hbm [shape: f32[8,128], index: 9, kind: output, shape index: {}]
  %s10 = sld [smem:[#allocation0]]
  $region70: #{tpu_custom_call.1} parent=0
    _
  %s12 = ssub.s32 1, %s10
  %s13 = scalar_select 0, %s12, %s10
  $region1: #{tpu_custom_call.1} parent=0
    #allocation2 [shape = 'u8[4096]{0}', space=vmem, size = 0x1000, scoped, tag = 'input window, operand 0, single buffered']
    #allocation3 [shape = 's32[1]{0}', space=sflag, size = 0x4, scoped, tag = 'scoped memory for tpu_custom_call.1']
    #allocation4 [shape = 's32[1]{0}', space=sflag, size = 0x4, scoped, tag = 'scoped memory for tpu_custom_call.1']
    #allocation5 [shape = 'u8[262144]{0}', space=vmem, size = 0x40000, scoped, tag = 'input window, operand 1, single buffered']
    #allocation6 [shape = 's32[1]{0}', space=sflag, size = 0x4, scoped, tag = 'scoped memory for tpu_custom_call.1']
    #allocation7 [shape = 'u8[2048]{0}', space=vmem, size = 0x800, scoped, tag = 'input window, operand 2, single buffered']
    #allocation8 [shape = 'u8[131072]{0}', space=vmem, size = 0x20000, scoped, tag = 'input window, operand 3, single buffered']
    #allocation9 [shape = 's32[1]{0}', space=sflag, size = 0x4, scoped, tag = 'scoped memory for tpu_custom_call.1']
    #allocation10 [shape = 'u8[32768]{0}', space=vmem, size = 0x8000, scoped, tag = 'input window, operand 5, single buffered']
    #allocation11 [shape = 'u8[32768]{0}', space=vmem, size = 0x8000, scoped, tag = 'input window, operand 7, single buffered']
    #allocation12 [shape = 's32[1]{0}', space=sflag, size = 0x4, scoped, tag = 'scoped memory for tpu_custom_call.1']
    #allocation13 [shape = 'u8[4096]{0}', space=vmem, size = 0x1000, scoped, tag = 'output window, operand 0, single buffered']
    %14 = vsyncpa [#allocation3], 0
    %15 = vsyncpa [#allocation6], 0
    %16 = vsyncpa [#allocation9], 0
    %17 = vsyncpa [#allocation12], 0
    %18 = vsyncpa [#allocation4], 0
    // Predicated region
    $region2: #{tpu_custom_call.1} parent=1 // pred_check
      _
    $region3: #{tpu_custom_call.1} parent=1 // pred_check_branch
      %20 = sbr.rel (0) target = $region5
    $region4: #{tpu_custom_call.1} parent=1 // pred_region
      %s22 = ssub.s32 128, 128
      %23 = vsyncadd [#allocation3], %s22
      %s25 = sshll.u32 [#allocation2], 4
      %s26 = int_to_ptr.vmem [resolvable:$true] %s25
      %28 = dma.hbm_to_vmem [thread:$0]  %s0, 128, %s26, [#allocation3]
    $region5: #{tpu_custom_call.1} parent=1 // pred_fallthru
      _
    // Predicated region
    $region6: #{tpu_custom_call.1} parent=1 // pred_check
      _
    $region7: #{tpu_custom_call.1} parent=1 // pred_check_branch
      %30 = sbr.rel (0) target = $region9
    $region8: #{tpu_custom_call.1} parent=1 // pred_region
      %s32 = ssub.s32 8192, 8192
      %33 = vsyncadd [#allocation6], %s32
      %s34 = sshll.u32 [#allocation5], 4
      %s35 = int_to_ptr.vmem [resolvable:$true] %s34
      %40 = dma.hbm_to_vmem [thread:$0]  %s1, 8192, %s35, [#allocation6], 256, 256, 16
    $region9: #{tpu_custom_call.1} parent=1 // pred_fallthru
      _
    // Predicated region
    $region10: #{tpu_custom_call.1} parent=1 // pred_check
      _
    $region11: #{tpu_custom_call.1} parent=1 // pred_check_branch
      %42 = sbr.rel (0) target = $region13
    $region12: #{tpu_custom_call.1} parent=1 // pred_region
      %s44 = ssub.s32 64, 64
      %45 = vsyncadd [#allocation6], %s44
      %s47 = sshll.u32 [#allocation7], 4
      %s48 = int_to_ptr.vmem [resolvable:$true] %s47
      %50 = dma.hbm_to_vmem [thread:$0]  %s2, 64, %s48, [#allocation6]
    $region13: #{tpu_custom_call.1} parent=1 // pred_fallthru
      _
    // Predicated region
    $region14: #{tpu_custom_call.1} parent=1 // pred_check
      _
    $region15: #{tpu_custom_call.1} parent=1 // pred_check_branch
      %52 = sbr.rel (0) target = $region17
    $region16: #{tpu_custom_call.1} parent=1 // pred_region
      %s54 = ssub.s32 4096, 4096
      %55 = vsyncadd [#allocation9], %s54
      %s56 = sshll.u32 [#allocation8], 4
      %s57 = int_to_ptr.vmem [resolvable:$true] %s56
      %62 = dma.hbm_to_vmem [thread:$0]  %s3, 4096, %s57, [#allocation9], 64, 64, 4
    $region17: #{tpu_custom_call.1} parent=1 // pred_fallthru
      _
    // Predicated region
    $region18: #{tpu_custom_call.1} parent=1 // pred_check
      _
    $region19: #{tpu_custom_call.1} parent=1 // pred_check_branch
      %64 = sbr.rel (0) target = $region21
    $region20: #{tpu_custom_call.1} parent=1 // pred_region
      _
    $region21: #{tpu_custom_call.1} parent=1 // pred_fallthru
      _
    // Predicated region
    $region22: #{tpu_custom_call.1} parent=1 // pred_check
      _
    $region23: #{tpu_custom_call.1} parent=1 // pred_check_branch
      %66 = sbr.rel (0) target = $region25
    $region24: #{tpu_custom_call.1} parent=1 // pred_region
      %s68 = ssub.s32 1024, 1024
      %69 = vsyncadd [#allocation9], %s68
      %s70 = sshll.u32 [#allocation10], 4
      %s71 = int_to_ptr.vmem [resolvable:$true] %s70
      %76 = dma.hbm_to_vmem [thread:$0]  %s5, 1024, %s71, [#allocation9], 64, 64, 4
    $region25: #{tpu_custom_call.1} parent=1 // pred_fallthru
      _
    // Predicated region
    $region26: #{tpu_custom_call.1} parent=1 // pred_check
      _
    $region27: #{tpu_custom_call.1} parent=1 // pred_check_branch
      %78 = sbr.rel (0) target = $region29
    $region28: #{tpu_custom_call.1} parent=1 // pred_region
      _
    $region29: #{tpu_custom_call.1} parent=1 // pred_fallthru
      _
    // Predicated region
    $region30: #{tpu_custom_call.1} parent=1 // pred_check
      _
    $region31: #{tpu_custom_call.1} parent=1 // pred_check_branch
      %80 = sbr.rel (0) target = $region33
    $region32: #{tpu_custom_call.1} parent=1 // pred_region
      %s82 = ssub.s32 1024, 1024
      %83 = vsyncadd [#allocation12], %s82
      %s84 = sshll.u32 [#allocation11], 4
      %s85 = int_to_ptr.vmem [resolvable:$true] %s84
      %90 = dma.hbm_to_vmem [thread:$0]  %s7, 1024, %s85, [#allocation12], 64, 64, 4
    $region33: #{tpu_custom_call.1} parent=1 // pred_fallthru
      _
    // Predicated region
    $region34: #{tpu_custom_call.1} parent=1 // pred_check
      _
    $region35: #{tpu_custom_call.1} parent=1 // pred_check_branch
      %92 = sbr.rel (0) target = $region37
    $region36: #{tpu_custom_call.1} parent=1 // pred_region
      _
    $region37: #{tpu_custom_call.1} parent=1 // pred_fallthru
      _
    // Predicated region
    $region38: #{tpu_custom_call.1} parent=1 // pred_check
      _
    $region39: #{tpu_custom_call.1} parent=1 // pred_check_branch
      %94 = sbr.rel (0) target = $region41
    $region40: #{tpu_custom_call.1} parent=1 // pred_region
      %95 = dma.done [#allocation3], 128
    $region41: #{tpu_custom_call.1} parent=1 // pred_fallthru
      _
    // Predicated region
    $region42: #{tpu_custom_call.1} parent=1 // pred_check
      _
    $region43: #{tpu_custom_call.1} parent=1 // pred_check_branch
      %97 = sbr.rel (0) target = $region45
    $region44: #{tpu_custom_call.1} parent=1 // pred_region
      %98 = dma.done [#allocation6], 8192
    $region45: #{tpu_custom_call.1} parent=1 // pred_fallthru
      _
    // Predicated region
    $region46: #{tpu_custom_call.1} parent=1 // pred_check
      _
    $region47: #{tpu_custom_call.1} parent=1 // pred_check_branch
      %100 = sbr.rel (0) target = $region49
    $region48: #{tpu_custom_call.1} parent=1 // pred_region
      %101 = dma.done [#allocation6], 64
    $region49: #{tpu_custom_call.1} parent=1 // pred_fallthru
      _
    // Predicated region
    $region50: #{tpu_custom_call.1} parent=1 // pred_check
      _
    $region51: #{tpu_custom_call.1} parent=1 // pred_check_branch
      %103 = sbr.rel (0) target = $region53
    $region52: #{tpu_custom_call.1} parent=1 // pred_region
      %104 = dma.done [#allocation9], 4096
    $region53: #{tpu_custom_call.1} parent=1 // pred_fallthru
      _
    // Predicated region
    $region54: #{tpu_custom_call.1} parent=1 // pred_check
      _
    $region55: #{tpu_custom_call.1} parent=1 // pred_check_branch
      %106 = sbr.rel (0) target = $region57
    $region56: #{tpu_custom_call.1} parent=1 // pred_region
      %107 = dma.done [#allocation9], 1024
    $region57: #{tpu_custom_call.1} parent=1 // pred_fallthru
      _
    // Predicated region
    $region58: #{tpu_custom_call.1} parent=1 // pred_check
      _
    $region59: #{tpu_custom_call.1} parent=1 // pred_check_branch
      %109 = sbr.rel (0) target = $region61
    $region60: #{tpu_custom_call.1} parent=1 // pred_region
      %110 = dma.done [#allocation12], 1024
    $region61: #{tpu_custom_call.1} parent=1 // pred_fallthru
      _
    %v112 = vld [vmem:[#allocation2] sm:$0xff]
    %v113 = vld [vmem:[#allocation5] sm:$0xff]
    %v114 = vld [vmem:[#allocation5 + $0x8] sm:$0xff]
    %v115 = vld [vmem:[#allocation5 + $0x10] sm:$0xff]
    %v116 = vld [vmem:[#allocation5 + $0x18] sm:$0xff]
    %v117 = vld [vmem:[#allocation5 + $0x20] sm:$0xff]
    %v118 = vld [vmem:[#allocation5 + $0x28] sm:$0xff]
    %v119 = vld [vmem:[#allocation5 + $0x30] sm:$0xff]
    %v120 = vld [vmem:[#allocation5 + $0x38] sm:$0xff]
    %v121 = vld [vmem:[#allocation5 + $0x40] sm:$0xff]
    %v122 = vld [vmem:[#allocation5 + $0x48] sm:$0xff]
    %v123 = vld [vmem:[#allocation5 + $0x50] sm:$0xff]
    %v124 = vld [vmem:[#allocation5 + $0x58] sm:$0xff]
    %v125 = vld [vmem:[#allocation5 + $0x60] sm:$0xff]
    %v126 = vld [vmem:[#allocation5 + $0x68] sm:$0xff]
    %v127 = vld [vmem:[#allocation5 + $0x70] sm:$0xff]
    %v128 = vld [vmem:[#allocation5 + $0x78] sm:$0xff]
    %v129 = vld [vmem:[#allocation5 + $0x80] sm:$0xff]
    %v130 = vld [vmem:[#allocation5 + $0x88] sm:$0xff]
    %v131 = vld [vmem:[#allocation5 + $0x90] sm:$0xff]
    %v132 = vld [vmem:[#allocation5 + $0x98] sm:$0xff]
    %v133 = vld [vmem:[#allocation5 + $0xa0] sm:$0xff]
    %v134 = vld [vmem:[#allocation5 + $0xa8] sm:$0xff]
    %v135 = vld [vmem:[#allocation5 + $0xb0] sm:$0xff]
    %v136 = vld [vmem:[#allocation5 + $0xb8] sm:$0xff]
    %v137 = vld [vmem:[#allocation5 + $0xc0] sm:$0xff]
    %v138 = vld [vmem:[#allocation5 + $0xc8] sm:$0xff]
    %v139 = vld [vmem:[#allocation5 + $0xd0] sm:$0xff]
    %v140 = vld [vmem:[#allocation5 + $0xd8] sm:$0xff]
    %v141 = vld [vmem:[#allocation5 + $0xe0] sm:$0xff]
    %v142 = vld [vmem:[#allocation5 + $0xe8] sm:$0xff]
    %v143 = vld [vmem:[#allocation5 + $0xf0] sm:$0xff]
    %v144 = vld [vmem:[#allocation5 + $0xf8] sm:$0xff]
    %v145 = vld [vmem:[#allocation5 + $0x100] sm:$0xff]
    %v146 = vld [vmem:[#allocation5 + $0x108] sm:$0xff]
    %v147 = vld [vmem:[#allocation5 + $0x110] sm:$0xff]
    %v148 = vld [vmem:[#allocation5 + $0x118] sm:$0xff]
    %v149 = vld [vmem:[#allocation5 + $0x120] sm:$0xff]
    %v150 = vld [vmem:[#allocation5 + $0x128] sm:$0xff]
    %v151 = vld [vmem:[#allocation5 + $0x130] sm:$0xff]
    %v152 = vld [vmem:[#allocation5 + $0x138] sm:$0xff]
    %v153 = vld [vmem:[#allocation5 + $0x140] sm:$0xff]
    %v154 = vld [vmem:[#allocation5 + $0x148] sm:$0xff]
    %v155 = vld [vmem:[#allocation5 + $0x150] sm:$0xff]
    %v156 = vld [vmem:[#allocation5 + $0x158] sm:$0xff]
    %v157 = vld [vmem:[#allocation5 + $0x160] sm:$0xff]
    %v158 = vld [vmem:[#allocation5 + $0x168] sm:$0xff]
    %v159 = vld [vmem:[#allocation5 + $0x170] sm:$0xff]
    %v160 = vld [vmem:[#allocation5 + $0x178] sm:$0xff]
    %v161 = vld [vmem:[#allocation5 + $0x180] sm:$0xff]
    %v162 = vld [vmem:[#allocation5 + $0x188] sm:$0xff]
    %v163 = vld [vmem:[#allocation5 + $0x190] sm:$0xff]
    %v164 = vld [vmem:[#allocation5 + $0x198] sm:$0xff]
    %v165 = vld [vmem:[#allocation5 + $0x1a0] sm:$0xff]
    %v166 = vld [vmem:[#allocation5 + $0x1a8] sm:$0xff]
    %v167 = vld [vmem:[#allocation5 + $0x1b0] sm:$0xff]
    %v168 = vld [vmem:[#allocation5 + $0x1b8] sm:$0xff]
    %v169 = vld [vmem:[#allocation5 + $0x1c0] sm:$0xff]
    %v170 = vld [vmem:[#allocation5 + $0x1c8] sm:$0xff]
    %v171 = vld [vmem:[#allocation5 + $0x1d0] sm:$0xff]
    %v172 = vld [vmem:[#allocation5 + $0x1d8] sm:$0xff]
    %v173 = vld [vmem:[#allocation5 + $0x1e0] sm:$0xff]
    %v174 = vld [vmem:[#allocation5 + $0x1e8] sm:$0xff]
    %v175 = vld [vmem:[#allocation5 + $0x1f0] sm:$0xff]
    %v176 = vld [vmem:[#allocation5 + $0x1f8] sm:$0xff]
    %v177 = vld [vmem:[#allocation7] sm:$0xf]
    %v179 = vlaneseq
    %v180 = vshrl.u32 %v179, 7
    %v181 = vsub.s32 0, %v180
    %v182 = vrot.slane %v177, %v181
    %v183 = vlaneseq
    %v184 = vshrl.u32 %v183, 7
    %v185 = vsub.s32 1, %v184
    %v186 = vrot.slane %v177, %v185
    %v187 = vlaneseq
    %v188 = vshrl.u32 %v187, 7
    %v189 = vsub.s32 2, %v188
    %v190 = vrot.slane %v177, %v189
    %v191 = vlaneseq
    %v192 = vshrl.u32 %v191, 7
    %v193 = vsub.s32 3, %v192
    %v194 = vrot.slane %v177, %v193
    %v200 = vunpack.c.l.b16 %v112
    %v201 = vunpack.c.h.b16 %v112
    %v202 = vpack.c.b16 %v200, %v200
    %v203 = vpack.c.b16 %v201, %v201
    %v270 = vunpack.c.l.b16 %v113
    %v271 = vunpack.c.h.b16 %v113
    %v272 = vunpack.c.l.b16 %v114
    %v273 = vunpack.c.h.b16 %v114
    %v274 = vunpack.c.l.b16 %v115
    %v275 = vunpack.c.h.b16 %v115
    %v276 = vunpack.c.l.b16 %v116
    %v277 = vunpack.c.h.b16 %v116
    %v278 = vunpack.c.l.b16 %v117
    %v279 = vunpack.c.h.b16 %v117
    %v280 = vunpack.c.l.b16 %v118
    %v281 = vunpack.c.h.b16 %v118
    %v282 = vunpack.c.l.b16 %v119
    %v283 = vunpack.c.h.b16 %v119
    %v284 = vunpack.c.l.b16 %v120
    %v285 = vunpack.c.h.b16 %v120
    %v286 = vunpack.c.l.b16 %v121
    %v287 = vunpack.c.h.b16 %v121
    %v288 = vunpack.c.l.b16 %v122
    %v289 = vunpack.c.h.b16 %v122
    %v290 = vunpack.c.l.b16 %v123
    %v291 = vunpack.c.h.b16 %v123
    %v292 = vunpack.c.l.b16 %v124
    %v293 = vunpack.c.h.b16 %v124
    %v294 = vunpack.c.l.b16 %v125
    %v295 = vunpack.c.h.b16 %v125
    %v296 = vunpack.c.l.b16 %v126
    %v297 = vunpack.c.h.b16 %v126
    %v298 = vunpack.c.l.b16 %v127
    %v299 = vunpack.c.h.b16 %v127
    %v300 = vunpack.c.l.b16 %v128
    %v301 = vunpack.c.h.b16 %v128
    %v302 = vunpack.c.l.b16 %v129
    %v303 = vunpack.c.h.b16 %v129
    %v304 = vunpack.c.l.b16 %v130
    %v305 = vunpack.c.h.b16 %v130
    %v306 = vunpack.c.l.b16 %v131
    %v307 = vunpack.c.h.b16 %v131
    %v308 = vunpack.c.l.b16 %v132
    %v309 = vunpack.c.h.b16 %v132
    %v310 = vunpack.c.l.b16 %v133
    %v311 = vunpack.c.h.b16 %v133
    %v312 = vunpack.c.l.b16 %v134
    %v313 = vunpack.c.h.b16 %v134
    %v314 = vunpack.c.l.b16 %v135
    %v315 = vunpack.c.h.b16 %v135
    %v316 = vunpack.c.l.b16 %v136
    %v317 = vunpack.c.h.b16 %v136
    %v318 = vunpack.c.l.b16 %v137
    %v319 = vunpack.c.h.b16 %v137
    %v320 = vunpack.c.l.b16 %v138
    %v321 = vunpack.c.h.b16 %v138
    %v322 = vunpack.c.l.b16 %v139
    %v323 = vunpack.c.h.b16 %v139
    %v324 = vunpack.c.l.b16 %v140
    %v325 = vunpack.c.h.b16 %v140
    %v326 = vunpack.c.l.b16 %v141
    %v327 = vunpack.c.h.b16 %v141
    %v328 = vunpack.c.l.b16 %v142
    %v329 = vunpack.c.h.b16 %v142
    %v330 = vunpack.c.l.b16 %v143
    %v331 = vunpack.c.h.b16 %v143
    %v332 = vunpack.c.l.b16 %v144
    %v333 = vunpack.c.h.b16 %v144
    %v334 = vunpack.c.l.b16 %v145
    %v335 = vunpack.c.h.b16 %v145
    %v336 = vunpack.c.l.b16 %v146
    %v337 = vunpack.c.h.b16 %v146
    %v338 = vunpack.c.l.b16 %v147
    %v339 = vunpack.c.h.b16 %v147
    %v340 = vunpack.c.l.b16 %v148
    %v341 = vunpack.c.h.b16 %v148
    %v342 = vunpack.c.l.b16 %v149
    %v343 = vunpack.c.h.b16 %v149
    %v344 = vunpack.c.l.b16 %v150
    %v345 = vunpack.c.h.b16 %v150
    %v346 = vunpack.c.l.b16 %v151
    %v347 = vunpack.c.h.b16 %v151
    %v348 = vunpack.c.l.b16 %v152
    %v349 = vunpack.c.h.b16 %v152
    %v350 = vunpack.c.l.b16 %v153
    %v351 = vunpack.c.h.b16 %v153
    %v352 = vunpack.c.l.b16 %v154
    %v353 = vunpack.c.h.b16 %v154
    %v354 = vunpack.c.l.b16 %v155
    %v355 = vunpack.c.h.b16 %v155
    %v356 = vunpack.c.l.b16 %v156
    %v357 = vunpack.c.h.b16 %v156
    %v358 = vunpack.c.l.b16 %v157
    %v359 = vunpack.c.h.b16 %v157
    %v360 = vunpack.c.l.b16 %v158
    %v361 = vunpack.c.h.b16 %v158
    %v362 = vunpack.c.l.b16 %v159
    %v363 = vunpack.c.h.b16 %v159
    %v364 = vunpack.c.l.b16 %v160
    %v365 = vunpack.c.h.b16 %v160
    %v366 = vunpack.c.l.b16 %v161
    %v367 = vunpack.c.h.b16 %v161
    %v368 = vunpack.c.l.b16 %v162
    %v369 = vunpack.c.h.b16 %v162
    %v370 = vunpack.c.l.b16 %v163
    %v371 = vunpack.c.h.b16 %v163
    %v372 = vunpack.c.l.b16 %v164
    %v373 = vunpack.c.h.b16 %v164
    %v374 = vunpack.c.l.b16 %v165
    %v375 = vunpack.c.h.b16 %v165
    %v376 = vunpack.c.l.b16 %v166
    %v377 = vunpack.c.h.b16 %v166
    %v378 = vunpack.c.l.b16 %v167
    %v379 = vunpack.c.h.b16 %v167
    %v380 = vunpack.c.l.b16 %v168
    %v381 = vunpack.c.h.b16 %v168
    %v382 = vunpack.c.l.b16 %v169
    %v383 = vunpack.c.h.b16 %v169
    %v384 = vunpack.c.l.b16 %v170
    %v385 = vunpack.c.h.b16 %v170
    %v386 = vunpack.c.l.b16 %v171
    %v387 = vunpack.c.h.b16 %v171
    %v388 = vunpack.c.l.b16 %v172
    %v389 = vunpack.c.h.b16 %v172
    %v390 = vunpack.c.l.b16 %v173
    %v391 = vunpack.c.h.b16 %v173
    %v392 = vunpack.c.l.b16 %v174
    %v393 = vunpack.c.h.b16 %v174
    %v394 = vunpack.c.l.b16 %v175
    %v395 = vunpack.c.h.b16 %v175
    %v396 = vunpack.c.l.b16 %v176
    %v397 = vunpack.c.h.b16 %v176
    %v398 = vpack.c.b16 %v274, %v270
    %v399 = vpack.c.b16 %v275, %v271
    %v400 = vpack.c.b16 %v276, %v272
    %v401 = vpack.c.b16 %v277, %v273
    %v402 = vpack.c.b16 %v282, %v278
    %v403 = vpack.c.b16 %v283, %v279
    %v404 = vpack.c.b16 %v284, %v280
    %v405 = vpack.c.b16 %v285, %v281
    %v406 = vpack.c.b16 %v290, %v286
    %v407 = vpack.c.b16 %v291, %v287
    %v408 = vpack.c.b16 %v292, %v288
    %v409 = vpack.c.b16 %v293, %v289
    %v410 = vpack.c.b16 %v298, %v294
    %v411 = vpack.c.b16 %v299, %v295
    %v412 = vpack.c.b16 %v300, %v296
    %v413 = vpack.c.b16 %v301, %v297
    %v414 = vpack.c.b16 %v306, %v302
    %v415 = vpack.c.b16 %v307, %v303
    %v416 = vpack.c.b16 %v308, %v304
    %v417 = vpack.c.b16 %v309, %v305
    %v418 = vpack.c.b16 %v314, %v310
    %v419 = vpack.c.b16 %v315, %v311
    %v420 = vpack.c.b16 %v316, %v312
    %v421 = vpack.c.b16 %v317, %v313
    %v422 = vpack.c.b16 %v322, %v318
    %v423 = vpack.c.b16 %v323, %v319
    %v424 = vpack.c.b16 %v324, %v320
    %v425 = vpack.c.b16 %v325, %v321
    %v426 = vpack.c.b16 %v330, %v326
    %v427 = vpack.c.b16 %v331, %v327
    %v428 = vpack.c.b16 %v332, %v328
    %v429 = vpack.c.b16 %v333, %v329
    %v430 = vpack.c.b16 %v338, %v334
    %v431 = vpack.c.b16 %v339, %v335
    %v432 = vpack.c.b16 %v340, %v336
    %v433 = vpack.c.b16 %v341, %v337
    %v434 = vpack.c.b16 %v346, %v342
    %v435 = vpack.c.b16 %v347, %v343
    %v436 = vpack.c.b16 %v348, %v344
    %v437 = vpack.c.b16 %v349, %v345
    %v438 = vpack.c.b16 %v354, %v350
    %v439 = vpack.c.b16 %v355, %v351
    %v440 = vpack.c.b16 %v356, %v352
    %v441 = vpack.c.b16 %v357, %v353
    %v442 = vpack.c.b16 %v362, %v358
    %v443 = vpack.c.b16 %v363, %v359
    %v444 = vpack.c.b16 %v364, %v360
    %v445 = vpack.c.b16 %v365, %v361
    %v446 = vpack.c.b16 %v370, %v366
    %v447 = vpack.c.b16 %v371, %v367
    %v448 = vpack.c.b16 %v372, %v368
    %v449 = vpack.c.b16 %v373, %v369
    %v450 = vpack.c.b16 %v378, %v374
    %v451 = vpack.c.b16 %v379, %v375
    %v452 = vpack.c.b16 %v380, %v376
    %v453 = vpack.c.b16 %v381, %v377
    %v454 = vpack.c.b16 %v386, %v382
    %v455 = vpack.c.b16 %v387, %v383
    %v456 = vpack.c.b16 %v388, %v384
    %v457 = vpack.c.b16 %v389, %v385
    %v458 = vpack.c.b16 %v394, %v390
    %v459 = vpack.c.b16 %v395, %v391
    %v460 = vpack.c.b16 %v396, %v392
    %v461 = vpack.c.b16 %v397, %v393
    %526 = vmatprep.subr.bf16.mxu0 %v427
    %527 = vmatpush1.bf16.msra.mxu0 %v426
    %528 = vmatprep.subr.bf16.mxu0 %v423
    %529 = vmatpush1.bf16.msra.mxu0 %v422
    %530 = vmatprep.subr.bf16.mxu0 %v419
    %531 = vmatpush1.bf16.msra.mxu0 %v418
    %532 = vmatprep.subr.bf16.mxu0 %v415
    %533 = vmatpush1.bf16.msra.mxu0 %v414
    %534 = vmatprep.subr.bf16.mxu0 %v411
    %535 = vmatpush1.bf16.msra.mxu0 %v410
    %536 = vmatprep.subr.bf16.mxu0 %v407
    %537 = vmatpush1.bf16.msra.mxu0 %v406
    %538 = vmatprep.subr.bf16.mxu0 %v403
    %539 = vmatpush1.bf16.msra.mxu0 %v402
    %540 = vmatprep.subr.bf16.mxu0 %v399
    %541 = vmatpush1.bf16.msra.mxu0 %v398
    %542 = vmatprep.subr.bf16.mxu0 %v459
    %543 = vmatpush2.bf16.msra.mxu0 %v458
    %544 = vmatprep.subr.bf16.mxu0 %v455
    %545 = vmatpush2.bf16.msra.mxu0 %v454
    %546 = vmatprep.subr.bf16.mxu0 %v451
    %547 = vmatpush2.bf16.msra.mxu0 %v450
    %548 = vmatprep.subr.bf16.mxu0 %v447
    %549 = vmatpush2.bf16.msra.mxu0 %v446
    %550 = vmatprep.subr.bf16.mxu0 %v443
    %551 = vmatpush2.bf16.msra.mxu0 %v442
    %552 = vmatprep.subr.bf16.mxu0 %v439
    %553 = vmatpush2.bf16.msra.mxu0 %v438
    %554 = vmatprep.subr.bf16.mxu0 %v435
    %555 = vmatpush2.bf16.msra.mxu0 %v434
    %556 = vmatprep.subr.bf16.mxu0 %v431
    %557 = vmatpush2.bf16.msra.mxu0 %v430
    %558 = vmatprep.mubr.bf16.mxu0 %v203
    %559 = vmatmul.mubr.bf16.gmra.mxu0 %v202
    %v560 = vpop.f32.mrf.mxu0
    %v561 = vadd.f32 %v182, %v560
    %v562 = vpop.f32.mrf.mxu0
    %v563 = vadd.f32 %v186, %v562
    %v564 = vpop.f32.mrf.mxu0
    %v565 = vpop.f32.mrf.mxu0
    %566 = vdwg.mxu0
    %567 = vmatprep.subr.bf16.mxu0 %v429
    %568 = vmatpush1.bf16.msra.mxu0 %v428
    %569 = vmatprep.subr.bf16.mxu0 %v425
    %570 = vmatpush1.bf16.msra.mxu0 %v424
    %571 = vmatprep.subr.bf16.mxu0 %v421
    %572 = vmatpush1.bf16.msra.mxu0 %v420
    %573 = vmatprep.subr.bf16.mxu0 %v417
    %574 = vmatpush1.bf16.msra.mxu0 %v416
    %575 = vmatprep.subr.bf16.mxu0 %v413
    %576 = vmatpush1.bf16.msra.mxu0 %v412
    %577 = vmatprep.subr.bf16.mxu0 %v409
    %578 = vmatpush1.bf16.msra.mxu0 %v408
    %579 = vmatprep.subr.bf16.mxu0 %v405
    %580 = vmatpush1.bf16.msra.mxu0 %v404
    %581 = vmatprep.subr.bf16.mxu0 %v401
    %582 = vmatpush1.bf16.msra.mxu0 %v400
    %583 = vmatprep.subr.bf16.mxu0 %v461
    %584 = vmatpush2.bf16.msra.mxu0 %v460
    %585 = vmatprep.subr.bf16.mxu0 %v457
    %586 = vmatpush2.bf16.msra.mxu0 %v456
    %587 = vmatprep.subr.bf16.mxu0 %v453
    %588 = vmatpush2.bf16.msra.mxu0 %v452
    %589 = vmatprep.subr.bf16.mxu0 %v449
    %590 = vmatpush2.bf16.msra.mxu0 %v448
    %591 = vmatprep.subr.bf16.mxu0 %v445
    %592 = vmatpush2.bf16.msra.mxu0 %v444
    %593 = vmatprep.subr.bf16.mxu0 %v441
    %594 = vmatpush2.bf16.msra.mxu0 %v440
    %595 = vmatprep.subr.bf16.mxu0 %v437
    %596 = vmatpush2.bf16.msra.mxu0 %v436
    %597 = vmatprep.subr.bf16.mxu0 %v433
    %598 = vmatpush2.bf16.msra.mxu0 %v432
    %599 = vmatprep.mubr.bf16.mxu0 %v203
    %600 = vmatmul.mubr.bf16.gmra.mxu0 %v202
    %v601 = vpop.f32.mrf.mxu0
    %v602 = vadd.f32 %v190, %v601
    %v603 = vpop.f32.mrf.mxu0
    %v604 = vadd.f32 %v194, %v603
    %v605 = vpop.f32.mrf.mxu0
    %v606 = vpop.f32.mrf.mxu0
    %607 = vdwg.mxu0
    %v608 = vmax.f32 %v561, 0.0
    %v609 = vmax.f32 %v563, 0.0
    %v610 = vmax.f32 %v602, 0.0
    %v611 = vmax.f32 %v604, 0.0
    %v612 = vpack.c.bf16 %v608, %v608
    %v613 = vpack.c.bf16 %v609, %v609
    %v614 = vpack.c.bf16 %v610, %v610
    %v615 = vpack.c.bf16 %v611, %v611
    %v616 = vld [vmem:[#allocation8] sm:$0xf]
    %v617 = vld [vmem:[#allocation8 + $0x4] sm:$0xf]
    %v618 = vld [vmem:[#allocation8 + $0x8] sm:$0xf]
    %v619 = vld [vmem:[#allocation8 + $0xc] sm:$0xf]
    %v620 = vld [vmem:[#allocation8 + $0x10] sm:$0xf]
    %v621 = vld [vmem:[#allocation8 + $0x14] sm:$0xf]
    %v622 = vld [vmem:[#allocation8 + $0x18] sm:$0xf]
    %v623 = vld [vmem:[#allocation8 + $0x1c] sm:$0xf]
    %v624 = vld [vmem:[#allocation8 + $0x20] sm:$0xf]
    %v625 = vld [vmem:[#allocation8 + $0x24] sm:$0xf]
    %v626 = vld [vmem:[#allocation8 + $0x28] sm:$0xf]
    %v627 = vld [vmem:[#allocation8 + $0x2c] sm:$0xf]
    %v628 = vld [vmem:[#allocation8 + $0x30] sm:$0xf]
    %v629 = vld [vmem:[#allocation8 + $0x34] sm:$0xf]
    %v630 = vld [vmem:[#allocation8 + $0x38] sm:$0xf]
    %v631 = vld [vmem:[#allocation8 + $0x3c] sm:$0xf]
    %v632 = vld [vmem:[#allocation8 + $0x40] sm:$0xf]
    %v633 = vld [vmem:[#allocation8 + $0x44] sm:$0xf]
    %v634 = vld [vmem:[#allocation8 + $0x48] sm:$0xf]
    %v635 = vld [vmem:[#allocation8 + $0x4c] sm:$0xf]
    %v636 = vld [vmem:[#allocation8 + $0x50] sm:$0xf]
    %v637 = vld [vmem:[#allocation8 + $0x54] sm:$0xf]
    %v638 = vld [vmem:[#allocation8 + $0x58] sm:$0xf]
    %v639 = vld [vmem:[#allocation8 + $0x5c] sm:$0xf]
    %v640 = vld [vmem:[#allocation8 + $0x60] sm:$0xf]
    %v641 = vld [vmem:[#allocation8 + $0x64] sm:$0xf]
    %v642 = vld [vmem:[#allocation8 + $0x68] sm:$0xf]
    %v643 = vld [vmem:[#allocation8 + $0x6c] sm:$0xf]
    %v644 = vld [vmem:[#allocation8 + $0x70] sm:$0xf]
    %v645 = vld [vmem:[#allocation8 + $0x74] sm:$0xf]
    %v646 = vld [vmem:[#allocation8 + $0x78] sm:$0xf]
    %v647 = vld [vmem:[#allocation8 + $0x7c] sm:$0xf]
    %v648 = vld [vmem:[#allocation8 + $0x80] sm:$0xf]
    %v649 = vld [vmem:[#allocation8 + $0x84] sm:$0xf]
    %v650 = vld [vmem:[#allocation8 + $0x88] sm:$0xf]
    %v651 = vld [vmem:[#allocation8 + $0x8c] sm:$0xf]
    %v652 = vld [vmem:[#allocation8 + $0x90] sm:$0xf]
    %v653 = vld [vmem:[#allocation8 + $0x94] sm:$0xf]
    %v654 = vld [vmem:[#allocation8 + $0x98] sm:$0xf]
    %v655 = vld [vmem:[#allocation8 + $0x9c] sm:$0xf]
    %v656 = vld [vmem:[#allocation8 + $0xa0] sm:$0xf]
    %v657 = vld [vmem:[#allocation8 + $0xa4] sm:$0xf]
    %v658 = vld [vmem:[#allocation8 + $0xa8] sm:$0xf]
    %v659 = vld [vmem:[#allocation8 + $0xac] sm:$0xf]
    %v660 = vld [vmem:[#allocation8 + $0xb0] sm:$0xf]
    %v661 = vld [vmem:[#allocation8 + $0xb4] sm:$0xf]
    %v662 = vld [vmem:[#allocation8 + $0xb8] sm:$0xf]
    %v663 = vld [vmem:[#allocation8 + $0xbc] sm:$0xf]
    %v664 = vld [vmem:[#allocation8 + $0xc0] sm:$0xf]
    %v665 = vld [vmem:[#allocation8 + $0xc4] sm:$0xf]
    %v666 = vld [vmem:[#allocation8 + $0xc8] sm:$0xf]
    %v667 = vld [vmem:[#allocation8 + $0xcc] sm:$0xf]
    %v668 = vld [vmem:[#allocation8 + $0xd0] sm:$0xf]
    %v669 = vld [vmem:[#allocation8 + $0xd4] sm:$0xf]
    %v670 = vld [vmem:[#allocation8 + $0xd8] sm:$0xf]
    %v671 = vld [vmem:[#allocation8 + $0xdc] sm:$0xf]
    %v672 = vld [vmem:[#allocation8 + $0xe0] sm:$0xf]
    %v673 = vld [vmem:[#allocation8 + $0xe4] sm:$0xf]
    %v674 = vld [vmem:[#allocation8 + $0xe8] sm:$0xf]
    %v675 = vld [vmem:[#allocation8 + $0xec] sm:$0xf]
    %v676 = vld [vmem:[#allocation8 + $0xf0] sm:$0xf]
    %v677 = vld [vmem:[#allocation8 + $0xf4] sm:$0xf]
    %v678 = vld [vmem:[#allocation8 + $0xf8] sm:$0xf]
    %v679 = vld [vmem:[#allocation8 + $0xfc] sm:$0xf]
    %v680 = vld [vmem:[%s4] sm:$0x1]
    %v682 = vlaneseq
    %v683 = vshrl.u32 %v682, 7
    %v684 = vsub.s32 0, %v683
    %v685 = vrot.slane %v680, %v684
    %v751 = vunpack.c.l.b16 %v616
    %v752 = vunpack.c.l.b16 %v617
    %v753 = vunpack.c.l.b16 %v618
    %v754 = vunpack.c.l.b16 %v619
    %v755 = vunpack.c.l.b16 %v620
    %v756 = vunpack.c.l.b16 %v621
    %v757 = vunpack.c.l.b16 %v622
    %v758 = vunpack.c.l.b16 %v623
    %v759 = vunpack.c.l.b16 %v624
    %v760 = vunpack.c.l.b16 %v625
    %v761 = vunpack.c.l.b16 %v626
    %v762 = vunpack.c.l.b16 %v627
    %v763 = vunpack.c.l.b16 %v628
    %v764 = vunpack.c.l.b16 %v629
    %v765 = vunpack.c.l.b16 %v630
    %v766 = vunpack.c.l.b16 %v631
    %v767 = vunpack.c.l.b16 %v632
    %v768 = vunpack.c.l.b16 %v633
    %v769 = vunpack.c.l.b16 %v634
    %v770 = vunpack.c.l.b16 %v635
    %v771 = vunpack.c.l.b16 %v636
    %v772 = vunpack.c.l.b16 %v637
    %v773 = vunpack.c.l.b16 %v638
    %v774 = vunpack.c.l.b16 %v639
    %v775 = vunpack.c.l.b16 %v640
    %v776 = vunpack.c.l.b16 %v641
    %v777 = vunpack.c.l.b16 %v642
    %v778 = vunpack.c.l.b16 %v643
    %v779 = vunpack.c.l.b16 %v644
    %v780 = vunpack.c.l.b16 %v645
    %v781 = vunpack.c.l.b16 %v646
    %v782 = vunpack.c.l.b16 %v647
    %v783 = vunpack.c.l.b16 %v648
    %v784 = vunpack.c.l.b16 %v649
    %v785 = vunpack.c.l.b16 %v650
    %v786 = vunpack.c.l.b16 %v651
    %v787 = vunpack.c.l.b16 %v652
    %v788 = vunpack.c.l.b16 %v653
    %v789 = vunpack.c.l.b16 %v654
    %v790 = vunpack.c.l.b16 %v655
    %v791 = vunpack.c.l.b16 %v656
    %v792 = vunpack.c.l.b16 %v657
    %v793 = vunpack.c.l.b16 %v658
    %v794 = vunpack.c.l.b16 %v659
    %v795 = vunpack.c.l.b16 %v660
    %v796 = vunpack.c.l.b16 %v661
    %v797 = vunpack.c.l.b16 %v662
    %v798 = vunpack.c.l.b16 %v663
    %v799 = vunpack.c.l.b16 %v664
    %v800 = vunpack.c.l.b16 %v665
    %v801 = vunpack.c.l.b16 %v666
    %v802 = vunpack.c.l.b16 %v667
    %v803 = vunpack.c.l.b16 %v668
    %v804 = vunpack.c.l.b16 %v669
    %v805 = vunpack.c.l.b16 %v670
    %v806 = vunpack.c.l.b16 %v671
    %v807 = vunpack.c.l.b16 %v672
    %v808 = vunpack.c.l.b16 %v673
    %v809 = vunpack.c.l.b16 %v674
    %v810 = vunpack.c.l.b16 %v675
    %v811 = vunpack.c.l.b16 %v676
    %v812 = vunpack.c.l.b16 %v677
    %v813 = vunpack.c.l.b16 %v678
    %v814 = vunpack.c.l.b16 %v679
    %v815 = vpack.c.b16 %v752, %v751
    %v816 = vpack.c.b16 %v754, %v753
    %v817 = vpack.c.b16 %v756, %v755
    %v818 = vpack.c.b16 %v758, %v757
    %v819 = vpack.c.b16 %v760, %v759
    %v820 = vpack.c.b16 %v762, %v761
    %v821 = vpack.c.b16 %v764, %v763
    %v822 = vpack.c.b16 %v766, %v765
    %v823 = vpack.c.b16 %v768, %v767
    %v824 = vpack.c.b16 %v770, %v769
    %v825 = vpack.c.b16 %v772, %v771
    %v826 = vpack.c.b16 %v774, %v773
    %v827 = vpack.c.b16 %v776, %v775
    %v828 = vpack.c.b16 %v778, %v777
    %v829 = vpack.c.b16 %v780, %v779
    %v830 = vpack.c.b16 %v782, %v781
    %v831 = vpack.c.b16 %v784, %v783
    %v832 = vpack.c.b16 %v786, %v785
    %v833 = vpack.c.b16 %v788, %v787
    %v834 = vpack.c.b16 %v790, %v789
    %v835 = vpack.c.b16 %v792, %v791
    %v836 = vpack.c.b16 %v794, %v793
    %v837 = vpack.c.b16 %v796, %v795
    %v838 = vpack.c.b16 %v798, %v797
    %v839 = vpack.c.b16 %v800, %v799
    %v840 = vpack.c.b16 %v802, %v801
    %v841 = vpack.c.b16 %v804, %v803
    %v842 = vpack.c.b16 %v806, %v805
    %v843 = vpack.c.b16 %v808, %v807
    %v844 = vpack.c.b16 %v810, %v809
    %v845 = vpack.c.b16 %v812, %v811
    %v846 = vpack.c.b16 %v814, %v813
    %879 = vmatprep.subr.bf16.mxu0 0
    %880 = vmatpush1.bf16.msra.mxu0 %v822
    %881 = vmatprep.subr.bf16.mxu0 0
    %882 = vmatpush1.bf16.msra.mxu0 %v821
    %883 = vmatprep.subr.bf16.mxu0 0
    %884 = vmatpush1.bf16.msra.mxu0 %v820
    %885 = vmatprep.subr.bf16.mxu0 0
    %886 = vmatpush1.bf16.msra.mxu0 %v819
    %887 = vmatprep.subr.bf16.mxu0 0
    %888 = vmatpush1.bf16.msra.mxu0 %v818
    %889 = vmatprep.subr.bf16.mxu0 0
    %890 = vmatpush1.bf16.msra.mxu0 %v817
    %891 = vmatprep.subr.bf16.mxu0 0
    %892 = vmatpush1.bf16.msra.mxu0 %v816
    %893 = vmatprep.subr.bf16.mxu0 0
    %894 = vmatpush1.bf16.msra.mxu0 %v815
    %895 = vmatprep.subr.bf16.mxu0 0
    %896 = vmatpush2.bf16.msra.mxu0 %v830
    %897 = vmatprep.subr.bf16.mxu0 0
    %898 = vmatpush2.bf16.msra.mxu0 %v829
    %899 = vmatprep.subr.bf16.mxu0 0
    %900 = vmatpush2.bf16.msra.mxu0 %v828
    %901 = vmatprep.subr.bf16.mxu0 0
    %902 = vmatpush2.bf16.msra.mxu0 %v827
    %903 = vmatprep.subr.bf16.mxu0 0
    %904 = vmatpush2.bf16.msra.mxu0 %v826
    %905 = vmatprep.subr.bf16.mxu0 0
    %906 = vmatpush2.bf16.msra.mxu0 %v825
    %907 = vmatprep.subr.bf16.mxu0 0
    %908 = vmatpush2.bf16.msra.mxu0 %v824
    %909 = vmatprep.subr.bf16.mxu0 0
    %910 = vmatpush2.bf16.msra.mxu0 %v823
    %911 = vmatprep.mubr.bf16.mxu0 %v613
    %912 = vmatmul.mubr.bf16.gmra.mxu0 %v612
    %v913 = vpop.f32.mrf.mxu0
    %v914 = vadd.f32 %v685, %v913
    %v915 = vpop.f32.mrf.mxu0
    %v916 = vpop.f32.mrf.mxu0
    %v917 = vpop.f32.mrf.mxu0
    %918 = vdwg.mxu0
    %919 = vmatprep.subr.bf16.mxu0 0
    %920 = vmatpush1.bf16.msra.mxu0 %v838
    %921 = vmatprep.subr.bf16.mxu0 0
    %922 = vmatpush1.bf16.msra.mxu0 %v837
    %923 = vmatprep.subr.bf16.mxu0 0
    %924 = vmatpush1.bf16.msra.mxu0 %v836
    %925 = vmatprep.subr.bf16.mxu0 0
    %926 = vmatpush1.bf16.msra.mxu0 %v835
    %927 = vmatprep.subr.bf16.mxu0 0
    %928 = vmatpush1.bf16.msra.mxu0 %v834
    %929 = vmatprep.subr.bf16.mxu0 0
    %930 = vmatpush1.bf16.msra.mxu0 %v833
    %931 = vmatprep.subr.bf16.mxu0 0
    %932 = vmatpush1.bf16.msra.mxu0 %v832
    %933 = vmatprep.subr.bf16.mxu0 0
    %934 = vmatpush1.bf16.msra.mxu0 %v831
    %935 = vmatprep.subr.bf16.mxu0 0
    %936 = vmatpush2.bf16.msra.mxu0 %v846
    %937 = vmatprep.subr.bf16.mxu0 0
    %938 = vmatpush2.bf16.msra.mxu0 %v845
    %939 = vmatprep.subr.bf16.mxu0 0
    %940 = vmatpush2.bf16.msra.mxu0 %v844
    %941 = vmatprep.subr.bf16.mxu0 0
    %942 = vmatpush2.bf16.msra.mxu0 %v843
    %943 = vmatprep.subr.bf16.mxu0 0
    %944 = vmatpush2.bf16.msra.mxu0 %v842
    %945 = vmatprep.subr.bf16.mxu0 0
    %946 = vmatpush2.bf16.msra.mxu0 %v841
    %947 = vmatprep.subr.bf16.mxu0 0
    %948 = vmatpush2.bf16.msra.mxu0 %v840
    %949 = vmatprep.subr.bf16.mxu0 0
    %950 = vmatpush2.bf16.msra.mxu0 %v839
    %951 = vmatprep.mubr.bf16.mxu0 %v615
    %952 = vmatmul.mubr.bf16.gmra.mxu0 %v614
    %v953 = vpop.f32.mrf.mxu0
    %v954 = vadd.f32 %v914, %v953
    %v955 = vpop.f32.mrf.mxu0
    %v956 = vpop.f32.mrf.mxu0
    %v957 = vpop.f32.mrf.mxu0
    %958 = vdwg.mxu0
    %v959 = vmax.f32 %v954, 0.0
    %v960 = vpack.c.bf16 %v959, %v959
    %v961 = vld [vmem:[#allocation10] sm:$0xf]
    %v962 = vld [vmem:[#allocation10 + $0x4] sm:$0xf]
    %v963 = vld [vmem:[#allocation10 + $0x8] sm:$0xf]
    %v964 = vld [vmem:[#allocation10 + $0xc] sm:$0xf]
    %v965 = vld [vmem:[#allocation10 + $0x10] sm:$0xf]
    %v966 = vld [vmem:[#allocation10 + $0x14] sm:$0xf]
    %v967 = vld [vmem:[#allocation10 + $0x18] sm:$0xf]
    %v968 = vld [vmem:[#allocation10 + $0x1c] sm:$0xf]
    %v969 = vld [vmem:[#allocation10 + $0x20] sm:$0xf]
    %v970 = vld [vmem:[#allocation10 + $0x24] sm:$0xf]
    %v971 = vld [vmem:[#allocation10 + $0x28] sm:$0xf]
    %v972 = vld [vmem:[#allocation10 + $0x2c] sm:$0xf]
    %v973 = vld [vmem:[#allocation10 + $0x30] sm:$0xf]
    %v974 = vld [vmem:[#allocation10 + $0x34] sm:$0xf]
    %v975 = vld [vmem:[#allocation10 + $0x38] sm:$0xf]
    %v976 = vld [vmem:[#allocation10 + $0x3c] sm:$0xf]
    %v977 = vld [vmem:[%s6] sm:$0x1]
    %v979 = vlaneseq
    %v980 = vshrl.u32 %v979, 7
    %v981 = vsub.s32 0, %v980
    %v982 = vrot.slane %v977, %v981
    %v1000 = vunpack.c.l.b16 %v961
    %v1001 = vunpack.c.l.b16 %v962
    %v1002 = vunpack.c.l.b16 %v963
    %v1003 = vunpack.c.l.b16 %v964
    %v1004 = vunpack.c.l.b16 %v965
    %v1005 = vunpack.c.l.b16 %v966
    %v1006 = vunpack.c.l.b16 %v967
    %v1007 = vunpack.c.l.b16 %v968
    %v1008 = vunpack.c.l.b16 %v969
    %v1009 = vunpack.c.l.b16 %v970
    %v1010 = vunpack.c.l.b16 %v971
    %v1011 = vunpack.c.l.b16 %v972
    %v1012 = vunpack.c.l.b16 %v973
    %v1013 = vunpack.c.l.b16 %v974
    %v1014 = vunpack.c.l.b16 %v975
    %v1015 = vunpack.c.l.b16 %v976
    %v1016 = vpack.c.b16 %v1001, %v1000
    %v1017 = vpack.c.b16 %v1003, %v1002
    %v1018 = vpack.c.b16 %v1005, %v1004
    %v1019 = vpack.c.b16 %v1007, %v1006
    %v1020 = vpack.c.b16 %v1009, %v1008
    %v1021 = vpack.c.b16 %v1011, %v1010
    %v1022 = vpack.c.b16 %v1013, %v1012
    %v1023 = vpack.c.b16 %v1015, %v1014
    %1032 = vmatprep.subr.bf16.mxu0 0
    %1033 = vmatpush1.bf16.msra.mxu0 %v1023
    %1034 = vmatprep.subr.bf16.mxu0 0
    %1035 = vmatpush1.bf16.msra.mxu0 %v1022
    %1036 = vmatprep.subr.bf16.mxu0 0
    %1037 = vmatpush1.bf16.msra.mxu0 %v1021
    %1038 = vmatprep.subr.bf16.mxu0 0
    %1039 = vmatpush1.bf16.msra.mxu0 %v1020
    %1040 = vmatprep.subr.bf16.mxu0 0
    %1041 = vmatpush1.bf16.msra.mxu0 %v1019
    %1042 = vmatprep.subr.bf16.mxu0 0
    %1043 = vmatpush1.bf16.msra.mxu0 %v1018
    %1044 = vmatprep.subr.bf16.mxu0 0
    %1045 = vmatpush1.bf16.msra.mxu0 %v1017
    %1046 = vmatprep.subr.bf16.mxu0 0
    %1047 = vmatpush1.bf16.msra.mxu0 %v1016
    %1048 = vmatprep.subr.bf16.mxu0 0
    %1049 = vmatpush2.bf16.msra.mxu0 0
    %1050 = vmatprep.subr.bf16.mxu0 0
    %1051 = vmatpush2.bf16.msra.mxu0 0
    %1052 = vmatprep.subr.bf16.mxu0 0
    %1053 = vmatpush2.bf16.msra.mxu0 0
    %1054 = vmatprep.subr.bf16.mxu0 0
    %1055 = vmatpush2.bf16.msra.mxu0 0
    %1056 = vmatprep.subr.bf16.mxu0 0
    %1057 = vmatpush2.bf16.msra.mxu0 0
    %1058 = vmatprep.subr.bf16.mxu0 0
    %1059 = vmatpush2.bf16.msra.mxu0 0
    %1060 = vmatprep.subr.bf16.mxu0 0
    %1061 = vmatpush2.bf16.msra.mxu0 0
    %1062 = vmatprep.subr.bf16.mxu0 0
    %1063 = vmatpush2.bf16.msra.mxu0 0
    %1064 = vmatprep.mubr.bf16.mxu0 0
    %1065 = vmatmul.mubr.bf16.gmra.mxu0 %v960
    %v1066 = vpop.f32.mrf.mxu0
    %v1067 = vadd.f32 %v982, %v1066
    %v1068 = vpop.f32.mrf.mxu0
    %v1069 = vpop.f32.mrf.mxu0
    %v1070 = vpop.f32.mrf.mxu0
    %1071 = vdwg.mxu0
    %v1072 = vmax.f32 %v1067, 0.0
    %v1073 = vpack.c.bf16 %v1072, %v1072
    %v1074 = vld [vmem:[#allocation11] sm:$0xf]
    %v1075 = vld [vmem:[#allocation11 + $0x4] sm:$0xf]
    %v1076 = vld [vmem:[#allocation11 + $0x8] sm:$0xf]
    %v1077 = vld [vmem:[#allocation11 + $0xc] sm:$0xf]
    %v1078 = vld [vmem:[#allocation11 + $0x10] sm:$0xf]
    %v1079 = vld [vmem:[#allocation11 + $0x14] sm:$0xf]
    %v1080 = vld [vmem:[#allocation11 + $0x18] sm:$0xf]
    %v1081 = vld [vmem:[#allocation11 + $0x1c] sm:$0xf]
    %v1082 = vld [vmem:[#allocation11 + $0x20] sm:$0xf]
    %v1083 = vld [vmem:[#allocation11 + $0x24] sm:$0xf]
    %v1084 = vld [vmem:[#allocation11 + $0x28] sm:$0xf]
    %v1085 = vld [vmem:[#allocation11 + $0x2c] sm:$0xf]
    %v1086 = vld [vmem:[#allocation11 + $0x30] sm:$0xf]
    %v1087 = vld [vmem:[#allocation11 + $0x34] sm:$0xf]
    %v1088 = vld [vmem:[#allocation11 + $0x38] sm:$0xf]
    %v1089 = vld [vmem:[#allocation11 + $0x3c] sm:$0xf]
    %v1090 = vld [vmem:[%s8] sm:$0x1]
    %v1092 = vlaneseq
    %v1093 = vshrl.u32 %v1092, 7
    %v1094 = vsub.s32 0, %v1093
    %v1095 = vrot.slane %v1090, %v1094
    %v1113 = vunpack.c.l.b16 %v1074
    %v1114 = vunpack.c.l.b16 %v1075
    %v1115 = vunpack.c.l.b16 %v1076
    %v1116 = vunpack.c.l.b16 %v1077
    %v1117 = vunpack.c.l.b16 %v1078
    %v1118 = vunpack.c.l.b16 %v1079
    %v1119 = vunpack.c.l.b16 %v1080
    %v1120 = vunpack.c.l.b16 %v1081
    %v1121 = vunpack.c.l.b16 %v1082
    %v1122 = vunpack.c.l.b16 %v1083
    %v1123 = vunpack.c.l.b16 %v1084
    %v1124 = vunpack.c.l.b16 %v1085
    %v1125 = vunpack.c.l.b16 %v1086
    %v1126 = vunpack.c.l.b16 %v1087
    %v1127 = vunpack.c.l.b16 %v1088
    %v1128 = vunpack.c.l.b16 %v1089
    %v1129 = vpack.c.b16 %v1114, %v1113
    %v1130 = vpack.c.b16 %v1116, %v1115
    %v1131 = vpack.c.b16 %v1118, %v1117
    %v1132 = vpack.c.b16 %v1120, %v1119
    %v1133 = vpack.c.b16 %v1122, %v1121
    %v1134 = vpack.c.b16 %v1124, %v1123
    %v1135 = vpack.c.b16 %v1126, %v1125
    %v1136 = vpack.c.b16 %v1128, %v1127
    %1145 = vmatprep.subr.bf16.mxu0 0
    %1146 = vmatpush1.bf16.msra.mxu0 %v1136
    %1147 = vmatprep.subr.bf16.mxu0 0
    %1148 = vmatpush1.bf16.msra.mxu0 %v1135
    %1149 = vmatprep.subr.bf16.mxu0 0
    %1150 = vmatpush1.bf16.msra.mxu0 %v1134
    %1151 = vmatprep.subr.bf16.mxu0 0
    %1152 = vmatpush1.bf16.msra.mxu0 %v1133
    %1153 = vmatprep.subr.bf16.mxu0 0
    %1154 = vmatpush1.bf16.msra.mxu0 %v1132
    %1155 = vmatprep.subr.bf16.mxu0 0
    %1156 = vmatpush1.bf16.msra.mxu0 %v1131
    %1157 = vmatprep.subr.bf16.mxu0 0
    %1158 = vmatpush1.bf16.msra.mxu0 %v1130
    %1159 = vmatprep.subr.bf16.mxu0 0
    %1160 = vmatpush1.bf16.msra.mxu0 %v1129
    %1161 = vmatprep.subr.bf16.mxu0 0
    %1162 = vmatpush2.bf16.msra.mxu0 0
    %1163 = vmatprep.subr.bf16.mxu0 0
    %1164 = vmatpush2.bf16.msra.mxu0 0
    %1165 = vmatprep.subr.bf16.mxu0 0
    %1166 = vmatpush2.bf16.msra.mxu0 0
    %1167 = vmatprep.subr.bf16.mxu0 0
    %1168 = vmatpush2.bf16.msra.mxu0 0
    %1169 = vmatprep.subr.bf16.mxu0 0
    %1170 = vmatpush2.bf16.msra.mxu0 0
    %1171 = vmatprep.subr.bf16.mxu0 0
    %1172 = vmatpush2.bf16.msra.mxu0 0
    %1173 = vmatprep.subr.bf16.mxu0 0
    %1174 = vmatpush2.bf16.msra.mxu0 0
    %1175 = vmatprep.subr.bf16.mxu0 0
    %1176 = vmatpush2.bf16.msra.mxu0 0
    %1177 = vmatprep.mubr.bf16.mxu0 0
    %1178 = vmatmul.mubr.bf16.gmra.mxu0 %v1073
    %v1179 = vpop.f32.mrf.mxu0
    %v1180 = vadd.f32 %v1095, %v1179
    %v1181 = vpop.f32.mrf.mxu0
    %v1182 = vpop.f32.mrf.mxu0
    %v1183 = vpop.f32.mrf.mxu0
    %1184 = vdwg.mxu0
    %1185 = vmax.xlane.f32.xlu0 %v1180
    %v1186 = vpop.xlane.xlu0 %1185
    %v1187 = vsub.f32 %v1180, %v1186
    %v1188 = vmul.f32 %v1187, 1.442695
    %v1189 = vpow.pop %v1188
    %1190 = vadd.xlane.f32.xlu0 %v1189
    %v1191 = vpop.xlane.xlu0 %1190
    %v1192 = vlog2.pop %v1191
    %v1193 = vmul.f32 %v1192, 0.6931472
    %v1194 = vsub.f32 %v1187, %v1193
    %1195 = vst [vmem:[#allocation13] sm:$0xff] %v1194
    // Predicated region
    $region62: #{tpu_custom_call.1} parent=1 // pred_check
      _
    $region63: #{tpu_custom_call.1} parent=1 // pred_check_branch
      %1197 = sbr.rel (0) target = $region65
    $region64: #{tpu_custom_call.1} parent=1 // pred_region
      %s1199 = ssub.s32 128, 128
      %1200 = vsyncadd [#allocation4], %s1199
      %s1202 = sshll.u32 [#allocation13], 4
      %s1203 = int_to_ptr.vmem [resolvable:$true] %s1202
      %1205 = dma.vmem_to_hbm [thread:$0]  %s1203, 128, %s9, [#allocation4]
    $region65: #{tpu_custom_call.1} parent=1 // pred_fallthru
      _
    // Predicated region
    $region66: #{tpu_custom_call.1} parent=1 // pred_check
      _
    $region67: #{tpu_custom_call.1} parent=1 // pred_check_branch
      %1207 = sbr.rel (0) target = $region69
    $region68: #{tpu_custom_call.1} parent=1 // pred_region
      %1208 = dma.done [#allocation4], 128
    $region69: #{tpu_custom_call.1} parent=1 // pred_fallthru
      _
    %1209 = vsyncpa [#allocation3], 1
    %1210 = vsyncpa [#allocation6], 1
    %1211 = vsyncpa [#allocation9], 1
    %1212 = vsyncpa [#allocation12], 1
    %1213 = vsyncpa [#allocation4], 1

</llo_original>
